<compile_context>
chip_gen: v5e
topology: v5e:2x2
jax: 0.10.0
libtpu: 0.0.40
codegen_flags: <defaults>
</compile_context>

<pallas_src>
import functools
import math

import jax
import jax.numpy as jnp
from jax import lax
from jax.experimental import pallas as pl
from jax.experimental.pallas import tpu as pltpu


def _pos_enc_kernel(t_ref, p_ref, e_ref, out_ref, *, pack):
    # t_ref:   (R, pack)  packed time values (pack consecutive batch rows per row)
    # p_ref:   (3, L)     fused params [a; b; lin_mask]
    # e_ref:   (pack, L)  0/1 one-hot expansion matrix, E[j, c] = (c // dim == j)
    # out_ref: (R, L)     lane-dense output
    a = p_ref[0:1, :]
    b = p_ref[1:2, :]
    lin_mask = p_ref[2:3, :]

    if pack > 1:
        # Exact lane expansion on the (otherwise idle) MXU:
        #   tw[r, c] = t[r, c // dim]
        # E is 0/1 with exactly one 1 per column and Precision.HIGHEST splits
        # the f32 operand exactly, so t is reproduced bit-for-bit while the
        # old 2*pack compare/select VPU ops per vreg disappear.
        tw = jnp.dot(t_ref[...], e_ref[...],
                     precision=lax.Precision.HIGHEST,
                     preferred_element_type=jnp.float32)
    else:
        tw = t_ref[...]                    # (R, 1) broadcasts against (1, L)

    v = tw * a + b
    # Linear lanes pass through, periodic lanes take sin.  sin on the linear
    # lanes is wasted VPU work but unavoidable without permuting the output
    # lane order (see module-level comment).
    out_ref[...] = jnp.where(lin_mask > 0.5, v, jnp.sin(v))


@functools.partial(jax.jit, static_argnames=("max_value", "block_rows"))
def positional_encoding(t, scale, shift, weight, bias, *, max_value,
                        block_rows=8192):
    """t: (B, 1) -> (B, dim) float32 = cat([linear, periodic], -1)."""
    B = t.shape[0]
    periodic_dim = scale.shape[0]
    linear_dim = weight.shape[0]
    dim = linear_dim + periodic_dim

    t = t.astype(jnp.float32).reshape(B, 1)

    # Fused per-output-column parameters (linear half first, as in torch.cat).
    # Note: linear is computed as t * (w / max_value) + bias instead of
    # (t / max_value) @ W.T + bias -- identical up to ~1 ulp.
    a = jnp.concatenate([weight.reshape(-1).astype(jnp.float32) / max_value,
                         scale.astype(jnp.float32)])
    b = jnp.concatenate([bias.astype(jnp.float32), shift.astype(jnp.float32)])
    m = jnp.concatenate([jnp.ones((linear_dim,), jnp.float32),
                         jnp.zeros((periodic_dim,), jnp.float32)])

    # Lane-dense packing factor: fold `pack` consecutive batch rows into one
    # 128-lane output row when dim divides 128.
    pack = 128 // dim if (dim <= 128 and 128 % dim == 0) else 1
    L = pack * dim

    params = jnp.stack([jnp.tile(a, pack), jnp.tile(b, pack),
                        jnp.tile(m, pack)])                       # (3, L)

    # 0/1 one-hot expansion matrix (exact): E[j, c] = 1 iff lane c belongs to
    # packed column j (c // dim == j).  Tiny and resident in VMEM.
    col = jnp.arange(L, dtype=jnp.int32) // dim
    expand = (col[None, :] ==
              jnp.arange(pack, dtype=jnp.int32)[:, None]).astype(jnp.float32)

    # Pad B to a multiple of `pack`; (B_pad, 1) -> (rows, pack) is a free
    # row-major reshape, as is (rows, L) -> (B_pad, dim) on the way out.
    B_pad = pl.cdiv(B, pack) * pack
    if B_pad != B:
        t = jnp.pad(t, ((0, B_pad - B), (0, 0)))
    rows = B_pad // pack
    t_packed = t.reshape(rows, pack)

    # --- Block sizing --------------------------------------------------------
    # Per grid step (double buffered):
    #   t   : rows_blk x 128 x 4 B   (minor dim `pack` lane-pads to 128 in VMEM)
    #   out : rows_blk x  L  x 4 B
    # Default 8192 rows -> ~16 MiB total; vmem_limit_bytes is set explicitly so
    # this is safe on v5e (16 MiB default scoped limit) and under v7x's 64 MiB.
    block_rows = int(block_rows)
    if rows <= block_rows:
        rows_blk = rows
    else:
        # Aim for >= 8 grid steps so the auto pipeline reaches steady state
        # (and a megacore split gets several steps per TensorCore) while
        # keeping output blocks >= ~256 KiB so the ~0.35 us/step fixed cost
        # stays negligible.
        tgt = max(512, pl.cdiv(rows, 8))
        rows_blk = max(8, (min(block_rows, tgt) // 8) * 8)
    grid = (pl.cdiv(rows, rows_blk),)

    vmem_need = 2 * rows_blk * (128 + L) * 4 + 4 * 8 * L * 4
    vmem_limit = min(int(vmem_need * 1.25) + (2 << 20), 96 << 20)

    cost = pl.CostEstimate(
        flops=(2 * pack + 2) * rows * L,
        transcendentals=rows * L,
        bytes_accessed=4 * (rows * pack + rows * L + (3 + pack) * L),
    )

    out_packed = pl.pallas_call(
        functools.partial(_pos_enc_kernel, pack=pack),
        out_shape=jax.ShapeDtypeStruct((rows, L), jnp.float32),
        grid=grid,
        in_specs=[
            pl.BlockSpec((rows_blk, pack), lambda i: (i, 0)),   # packed t tiles
            pl.BlockSpec((3, L), lambda i: (0, 0)),             # fused params (resident)
            pl.BlockSpec((pack, L), lambda i: (0, 0)),          # one-hot expansion
        ],
        out_specs=pl.BlockSpec((rows_blk, L), lambda i: (i, 0)),
        compiler_params=pltpu.CompilerParams(
            dimension_semantics=("parallel",),
            vmem_limit_bytes=vmem_limit,
        ),
        cost_estimate=cost,
    )(t_packed, params, expand)

    # (rows, pack*dim) row-major == (B_pad, dim) row-major.  The [:B] slice is
    # only needed when B % pack != 0; keep the padded view flowing downstream
    # when possible (an un-fused slice costs an extra HBM pass on the output).
    out = out_packed.reshape(B_pad, dim)
    return out if B_pad == B else out[:B]


def make_params(dim, max_value, key):
    """Deterministic parameter construction mirroring the module's __init__."""
    linear_dim = dim // 2
    periodic_dim = dim - linear_dim

    scale = jnp.exp(
        -2.0 * jnp.arange(periodic_dim, dtype=jnp.float32)
        * math.log(max_value) / periodic_dim
    )
    shift = jnp.where(
        (jnp.arange(periodic_dim) % 2) == 0, 0.5 * math.pi, 0.0
    ).astype(jnp.float32)

    # nn.Linear(1, linear_dim): weight (linear_dim, 1), bias (linear_dim,),
    # init U(-1, 1) since fan_in = 1 (deterministic via PRNGKey).
    kw, kb = jax.random.split(key)
    weight = jax.random.uniform(kw, (linear_dim, 1), jnp.float32, -1.0, 1.0)
    bias = jax.random.uniform(kb, (linear_dim,), jnp.float32, -1.0, 1.0)
    return scale, shift, weight, bias


if __name__ == "__main__":
    dim = 32
    max_value = 100.0

    key = jax.random.PRNGKey(0)
    k_t, k_t2, k_p = jax.random.split(key, 3)
    scale, shift, weight, bias = make_params(dim, max_value, k_p)

    def reference(tt):
        periodic = jnp.sin(tt * scale[None, :] + shift[None, :])
        linear = (tt / max_value) @ weight.T + bias[None, :]
        return jnp.concatenate([linear, periodic], axis=-1)

    # Small shape matching the module's forward (t: (B, 1)).
    B = 8
    t = jax.random.uniform(k_t, (B, 1), jnp.float32, 0.0, max_value)
    out = jax.block_until_ready(
        positional_encoding(t, scale, shift, weight, bias, max_value=max_value))
    assert out.shape == (B, dim)
    assert jnp.allclose(out, reference(t), atol=1e-5, rtol=1e-5)

    # Exercise the batch grid, lane packing, padding (B % pack != 0) and a
    # partial tail block with a still-small problem.
    B2 = 1037
    t2 = jax.random.uniform(k_t2, (B2, 1), jnp.float32, 0.0, max_value)
    out2 = jax.block_until_ready(
        positional_encoding(t2, scale, shift, weight, bias,
                            max_value=max_value, block_rows=64))
    assert out2.shape == (B2, dim)
    assert jnp.allclose(out2, reference(t2), atol=1e-5, rtol=1e-5)

    print("KERNEL_OK")
</pallas_src>

<mosaic_0001>
module attributes {stable_mosaic.version = 11 : i64} {
  func.func @_pos_enc_kernel(%arg0: i32, %arg1: memref<2x4xf32, #tpu.memory_space<vmem>>, %arg2: memref<3x128xf32, #tpu.memory_space<vmem>>, %arg3: memref<4x128xf32, #tpu.memory_space<vmem>>, %arg4: memref<2x128xf32, #tpu.memory_space<vmem>>) attributes {dimension_semantics = [#tpu.dimension_semantics<parallel>], iteration_bounds = array<i64: 1>, scalar_prefetch = 0 : i64, scratch_operands = 0 : i64, tpu.core_type = #tpu.core_type<tc>, window_params = [{transform_indices = @transform_0, window_bounds = array<i64: 2, 4>}, {pipeline_mode = #tpu.pipeline_mode<synchronous>, transform_indices = @transform_1, window_bounds = array<i64: 3, 128>}, {pipeline_mode = #tpu.pipeline_mode<synchronous>, transform_indices = @transform_2, window_bounds = array<i64: 4, 128>}, {transform_indices = @transform_3, window_bounds = array<i64: 2, 128>}]} {
    %c0 = arith.constant 0 : index
    %c0_0 = arith.constant 0 : index
    %0 = vector.load %arg2[%c0, %c0_0] : memref<3x128xf32, #tpu.memory_space<vmem>>, vector<1x128xf32>
    %c1 = arith.constant 1 : index
    %c0_1 = arith.constant 0 : index
    %1 = vector.load %arg2[%c1, %c0_1] : memref<3x128xf32, #tpu.memory_space<vmem>>, vector<1x128xf32>
    %c2 = arith.constant 2 : index
    %c0_2 = arith.constant 0 : index
    %2 = vector.load %arg2[%c2, %c0_2] : memref<3x128xf32, #tpu.memory_space<vmem>>, vector<1x128xf32>
    %c0_3 = arith.constant 0 : index
    %c0_4 = arith.constant 0 : index
    %3 = vector.load %arg1[%c0_3, %c0_4] : memref<2x4xf32, #tpu.memory_space<vmem>>, vector<2x4xf32>
    %c0_5 = arith.constant 0 : index
    %c0_6 = arith.constant 0 : index
    %4 = vector.load %arg3[%c0_5, %c0_6] : memref<4x128xf32, #tpu.memory_space<vmem>>, vector<4x128xf32>
    %cst = arith.constant dense<0.000000e+00> : vector<2x128xf32>
    %5 = tpu.matmul %3, %4, %cst {dimension_numbers = #tpu.dot_dimension_numbers<[1], [0], [0], [1], [0, 0, 1, 1], [], []>, precision = #tpu.contract_precision<fp32>} : vector<2x4xf32>, vector<4x128xf32>, vector<2x128xf32> -> vector<2x128xf32>
    %6 = vector.broadcast %0 : vector<1x128xf32> to vector<2x128xf32>
    %7 = arith.mulf %5, %6 : vector<2x128xf32>
    %8 = vector.broadcast %1 : vector<1x128xf32> to vector<2x128xf32>
    %9 = arith.addf %7, %8 : vector<2x128xf32>
    %cst_7 = arith.constant 5.000000e-01 : f32
    %10 = vector.broadcast %cst_7 : f32 to vector<1x128xf32>
    %11 = arith.cmpf ogt, %2, %10 : vector<1x128xf32>
    %12 = math.sin %9 : vector<2x128xf32>
    %13 = vector.shape_cast %11 : vector<1x128xi1> to vector<1x128xi1>
    %14 = vector.broadcast %13 : vector<1x128xi1> to vector<2x128xi1>
    %15 = arith.select %14, %9, %12 : vector<2x128xi1>, vector<2x128xf32>
    %c0_8 = arith.constant 0 : index
    %c0_9 = arith.constant 0 : index
    %16 = vector.load %arg4[%c0_8, %c0_9] : memref<2x128xf32, #tpu.memory_space<vmem>>, vector<2x128xf32>
    tpu.vector_store %arg4[%c0_8, %c0_9], %15 {strides = array<i32>} : memref<2x128xf32, #tpu.memory_space<vmem>>, vector<2x128xf32>,
    return
  }
  func.func @transform_0(%arg0: i32) -> (i32, i32) {
    %c0_i32 = arith.constant 0 : i32
    %c0_i32_0 = arith.constant 0 : i32
    return %arg0, %c0_i32 : i32, i32
  }
  func.func @transform_1(%arg0: i32) -> (i32, i32) {
    %c0_i32 = arith.constant 0 : i32
    %c0_i32_0 = arith.constant 0 : i32
    %c0_i32_1 = arith.constant 0 : i32
    return %c0_i32, %c0_i32_0 : i32, i32
  }
  func.func @transform_2(%arg0: i32) -> (i32, i32) {
    %c0_i32 = arith.constant 0 : i32
    %c0_i32_0 = arith.constant 0 : i32
    %c0_i32_1 = arith.constant 0 : i32
    return %c0_i32, %c0_i32_0 : i32, i32
  }
  func.func @transform_3(%arg0: i32) -> (i32, i32) {
    %c0_i32 = arith.constant 0 : i32
    %c0_i32_0 = arith.constant 0 : i32
    return %arg0, %c0_i32 : i32, i32
  }
}

</mosaic_0001>

<llo_original>
// kernel: tile.25
$region0: #{tile.25}
  %s0 = inlined_call_operand.vmem [shape: f32[4,32], index: 0, kind: input, shape index: {}]
  %s1 = inlined_call_operand.vmem [shape: f32[1,128], index: 1, kind: output, shape index: {}]
  $region1: #{tile.25} parent=0
    #allocation0 [shape = 'u8[4096]{0}', space=vmem, size = 0x1000, scoped, tag = 'scoped mem for output reshape']
    #allocation1 [shape = 'u8[4096]{0}', space=vmem, size = 0x1000, scoped, tag = 'scoped mem for input reshape']
    %s3 = ssub.s32 16, 1
    %v4 = vld [vmem:[%s0] sm:%s3]
    %5 = vst [vmem:[#allocation1] sm:%s3] %v4
    %v6 = vld [vmem:[#allocation1] sm:$0x1]
    %vm7 = vcmask 261120
    %8 = vst.msk [vmem:[#allocation0] sm:$0x1] %vm7, %v6
    %s9 = scalar_lea.vmem [#allocation1], 3
    %v10 = vld [vmem:[%s9] sm:$0x1]
    %11 = vrot.lane.b32.xlu0 %v10, 96
    %v12 = vpop.permute.xlu0 %11
    %vm13 = vcmask 1048320
    %14 = vst.msk [vmem:[#allocation0] sm:$0x1] %vm13, %v12
    %s15 = scalar_lea.vmem [#allocation1], 2
    %v16 = vld [vmem:[%s15] sm:$0x1]
    %17 = vrot.lane.b32.xlu0 %v16, 64
    %v18 = vpop.permute.xlu0 %17
    %vm19 = vcmask 785920
    %20 = vst.msk [vmem:[#allocation0] sm:$0x1] %vm19, %v18
    %s21 = scalar_lea.vmem [#allocation1], 1
    %v22 = vld [vmem:[%s21] sm:$0x1]
    %23 = vrot.lane.b32.xlu0 %v22, 32
    %v24 = vpop.permute.xlu0 %23
    %vm25 = vcmask 523520
    %26 = vst.msk [vmem:[#allocation0] sm:$0x1] %vm25, %v24
    %s28 = ssub.s32 2, 1
    %v29 = vld [vmem:[#allocation0] sm:%s28]
    %s31 = ssub.s32 2, 1
    %32 = vst [vmem:[%s1] sm:%s31] %v29

// kernel: tile.17
$region0: #{tile.17}
  #allocation0 [shape = 's32[1]{0}', space=sflag, size = 0x4, scoped, tag = 'scoped memory for tile.17']
  %s0 = inlined_call_operand.vmem [shape: f32[32], index: 0, kind: input, shape index: {}]
  %s1 = inlined_call_operand.vmem [shape: f32[4,32], index: 1, kind: output, shape index: {}]
  // Predicated region
  $region2: #{tile.17} parent=0 // pred_check
    _
  $region3: #{tile.17} parent=0 // pred_check_branch
    %3 = sbr.rel (0) target = $region5
  $region4: #{tile.17} parent=0 // pred_region
    _
  $region5: #{tile.17} parent=0 // pred_fallthru
    _
  %v4 = vld [vmem:[%s0] ss:$0 sm:$0xff]
  %5 = vst [vmem:[%s1] sm:$0xf] %v4

// kernel: positional_encoding.1
$region0: #{positional_encoding.1}
  #allocation0 [shape = 'u32[]', space=smem, size = 0x4, offset = 0x4, fixed_abs, tag = 'smem constant byte address 0x4 - core index']
  #allocation1 [shape = 'u32[72,128]{1,0:T(1,128)}', space=vmem, size = 0x9000, scoped, tag = 'internal scratch']
  %s0 = inlined_call_operand.vmem [shape: f32[2,4], index: 0, kind: input, shape index: {}]
  %s1 = inlined_call_operand.vmem [shape: f32[3,128], index: 1, kind: input, shape index: {}]
  %s2 = inlined_call_operand.vmem [shape: f32[4,128], index: 2, kind: input, shape index: {}]
  %s3 = inlined_call_operand.vmem [shape: f32[2,128], index: 3, kind: output, shape index: {}]
  %s4 = sld [smem:[#allocation0]]
  $region22: #{positional_encoding.1} parent=0
    _
  %s6 = ssub.s32 1, %s4
  %s7 = scalar_select 0, %s6, %s4
  // Predicated region
  $region2: #{positional_encoding.1} parent=0 // pred_check
    _
  $region3: #{positional_encoding.1} parent=0 // pred_check_branch
    %9 = sbr.rel (0) target = $region5
  $region4: #{positional_encoding.1} parent=0 // pred_region
    _
  $region5: #{positional_encoding.1} parent=0 // pred_fallthru
    _
  // Predicated region
  $region6: #{positional_encoding.1} parent=0 // pred_check
    _
  $region7: #{positional_encoding.1} parent=0 // pred_check_branch
    %11 = sbr.rel (0) target = $region9
  $region8: #{positional_encoding.1} parent=0 // pred_region
    _
  $region9: #{positional_encoding.1} parent=0 // pred_fallthru
    _
  // Predicated region
  $region10: #{positional_encoding.1} parent=0 // pred_check
    _
  $region11: #{positional_encoding.1} parent=0 // pred_check_branch
    %13 = sbr.rel (0) target = $region13
  $region12: #{positional_encoding.1} parent=0 // pred_region
    _
  $region13: #{positional_encoding.1} parent=0 // pred_fallthru
    _
  %v14 = vld [vmem:[%s1] sm:$0x1]
  %v15 = vld [vmem:[%s1 + $0x1] sm:$0x1]
  %v16 = vld [vmem:[%s1 + $0x2] sm:$0x1]
  %v17 = vld [vmem:[%s0] sm:$0x3]
  %v18 = vld [vmem:[%s2] sm:$0xf]
  %vm19 = vcmask 31744
  %v21 = vsel %vm19, %v17, 0
  %vm23 = vcmask 1043456
  %v25 = vsel %vm23, %v18, 0
  %27 = vmatpush.msra.mxu0 0.0
  %28 = vmatpush.msra.mxu0 0.0
  %29 = vmatpush.msra.mxu0 0.0
  %30 = vmatpush.msra.mxu0 0.0
  %31 = vmatpush.msra.mxu0 0.0
  %32 = vmatpush.msra.mxu0 0.0
  %33 = vmatpush.msra.mxu0 0.0
  %34 = vmatpush.msra.mxu0 0.0
  %35 = vmatpush.msra.mxu0 0.0
  %36 = vmatpush.msra.mxu0 0.0
  %37 = vmatpush.msra.mxu0 0.0
  %38 = vmatpush.msra.mxu0 0.0
  %39 = vmatpush.msra.mxu0 0.0
  %40 = vmatpush.msra.mxu0 0.0
  %41 = vmatpush.msra.mxu0 0.0
  %v42 = vand.u32 %v25, 4294901760
  %43 = vmatpush.msra.mxu0 %v42
  %v44 = vand.u32 %v21, 4294901760
  %v45 = vsub.f32 %v21, %v44
  %v46 = vand.u32 %v45, 4294901760
  %v47 = vsub.f32 %v45, %v46
  %v48 = vand.u32 %v47, 4294901760
  %49 = vmatmul.f32.gmra.mxu0 %v48
  %v50 = vpop.f32.mrf.mxu0
  %v51 = vadd.f32 0.0, %v50
  %52 = vdwg.mxu0
  %53 = vmatpush.msra.mxu0 0.0
  %54 = vmatpush.msra.mxu0 0.0
  %55 = vmatpush.msra.mxu0 0.0
  %56 = vmatpush.msra.mxu0 0.0
  %57 = vmatpush.msra.mxu0 0.0
  %58 = vmatpush.msra.mxu0 0.0
  %59 = vmatpush.msra.mxu0 0.0
  %60 = vmatpush.msra.mxu0 0.0
  %61 = vmatpush.msra.mxu0 0.0
  %62 = vmatpush.msra.mxu0 0.0
  %63 = vmatpush.msra.mxu0 0.0
  %64 = vmatpush.msra.mxu0 0.0
  %65 = vmatpush.msra.mxu0 0.0
  %66 = vmatpush.msra.mxu0 0.0
  %67 = vmatpush.msra.mxu0 0.0
  %v68 = vand.u32 %v25, 4294901760
  %v69 = vsub.f32 %v25, %v68
  %v70 = vand.u32 %v69, 4294901760
  %v71 = vsub.f32 %v69, %v70
  %v72 = vand.u32 %v71, 4294901760
  %73 = vmatpush.msra.mxu0 %v72
  %v74 = vand.u32 %v21, 4294901760
  %75 = vmatmul.f32.gmra.mxu0 %v74
  %v76 = vpop.f32.mrf.mxu0
  %v77 = vadd.f32 %v51, %v76
  %78 = vdwg.mxu0
  %79 = vmatpush.msra.mxu0 0.0
  %80 = vmatpush.msra.mxu0 0.0
  %81 = vmatpush.msra.mxu0 0.0
  %82 = vmatpush.msra.mxu0 0.0
  %83 = vmatpush.msra.mxu0 0.0
  %84 = vmatpush.msra.mxu0 0.0
  %85 = vmatpush.msra.mxu0 0.0
  %86 = vmatpush.msra.mxu0 0.0
  %87 = vmatpush.msra.mxu0 0.0
  %88 = vmatpush.msra.mxu0 0.0
  %89 = vmatpush.msra.mxu0 0.0
  %90 = vmatpush.msra.mxu0 0.0
  %91 = vmatpush.msra.mxu0 0.0
  %92 = vmatpush.msra.mxu0 0.0
  %93 = vmatpush.msra.mxu0 0.0
  %v94 = vand.u32 %v25, 4294901760
  %v95 = vsub.f32 %v25, %v94
  %96 = vmatpush.msra.mxu0 %v95
  %v97 = vand.u32 %v21, 4294901760
  %v98 = vsub.f32 %v21, %v97
  %99 = vmatmul.f32.gmra.mxu0 %v98
  %v100 = vpop.f32.mrf.mxu0
  %v101 = vadd.f32 %v77, %v100
  %102 = vdwg.mxu0
  %103 = vmatpush.msra.mxu0 0.0
  %104 = vmatpush.msra.mxu0 0.0
  %105 = vmatpush.msra.mxu0 0.0
  %106 = vmatpush.msra.mxu0 0.0
  %107 = vmatpush.msra.mxu0 0.0
  %108 = vmatpush.msra.mxu0 0.0
  %109 = vmatpush.msra.mxu0 0.0
  %110 = vmatpush.msra.mxu0 0.0
  %111 = vmatpush.msra.mxu0 0.0
  %112 = vmatpush.msra.mxu0 0.0
  %113 = vmatpush.msra.mxu0 0.0
  %114 = vmatpush.msra.mxu0 0.0
  %115 = vmatpush.msra.mxu0 0.0
  %116 = vmatpush.msra.mxu0 0.0
  %117 = vmatpush.msra.mxu0 0.0
  %v118 = vand.u32 %v25, 4294901760
  %119 = vmatpush.msra.mxu0 %v118
  %v120 = vand.u32 %v21, 4294901760
  %v121 = vsub.f32 %v21, %v120
  %v122 = vand.u32 %v121, 4294901760
  %123 = vmatmul.f32.gmra.mxu0 %v122
  %v124 = vpop.f32.mrf.mxu0
  %v125 = vadd.f32 %v101, %v124
  %126 = vdwg.mxu0
  %127 = vmatpush.msra.mxu0 0.0
  %128 = vmatpush.msra.mxu0 0.0
  %129 = vmatpush.msra.mxu0 0.0
  %130 = vmatpush.msra.mxu0 0.0
  %131 = vmatpush.msra.mxu0 0.0
  %132 = vmatpush.msra.mxu0 0.0
  %133 = vmatpush.msra.mxu0 0.0
  %134 = vmatpush.msra.mxu0 0.0
  %135 = vmatpush.msra.mxu0 0.0
  %136 = vmatpush.msra.mxu0 0.0
  %137 = vmatpush.msra.mxu0 0.0
  %138 = vmatpush.msra.mxu0 0.0
  %139 = vmatpush.msra.mxu0 0.0
  %140 = vmatpush.msra.mxu0 0.0
  %141 = vmatpush.msra.mxu0 0.0
  %v142 = vand.u32 %v25, 4294901760
  %v143 = vsub.f32 %v25, %v142
  %v144 = vand.u32 %v143, 4294901760
  %145 = vmatpush.msra.mxu0 %v144
  %v146 = vand.u32 %v21, 4294901760
  %147 = vmatmul.f32.gmra.mxu0 %v146
  %v148 = vpop.f32.mrf.mxu0
  %v149 = vadd.f32 %v125, %v148
  %150 = vdwg.mxu0
  %151 = vmatpush.msra.mxu0 0.0
  %152 = vmatpush.msra.mxu0 0.0
  %153 = vmatpush.msra.mxu0 0.0
  %154 = vmatpush.msra.mxu0 0.0
  %155 = vmatpush.msra.mxu0 0.0
  %156 = vmatpush.msra.mxu0 0.0
  %157 = vmatpush.msra.mxu0 0.0
  %158 = vmatpush.msra.mxu0 0.0
  %159 = vmatpush.msra.mxu0 0.0
  %160 = vmatpush.msra.mxu0 0.0
  %161 = vmatpush.msra.mxu0 0.0
  %162 = vmatpush.msra.mxu0 0.0
  %163 = vmatpush.msra.mxu0 0.0
  %164 = vmatpush.msra.mxu0 0.0
  %165 = vmatpush.msra.mxu0 0.0
  %v166 = vand.u32 %v25, 4294901760
  %167 = vmatpush.msra.mxu0 %v166
  %v168 = vand.u32 %v21, 4294901760
  %169 = vmatmul.f32.gmra.mxu0 %v168
  %v170 = vpop.f32.mrf.mxu0
  %v171 = vadd.f32 %v149, %v170
  %172 = vdwg.mxu0
  %v173 = vperm.slane %v14, 0
  %v174 = vmul.f32 %v171, %v173
  %v175 = vperm.slane %v15, 0
  %v176 = vadd.f32 %v174, %v175
  %vm177 = vcmp.gt.f32.partialorder %v16, 0.5
  %v178 = vand.u32 2147483647, %v176
  %vm179 = vcmp.le.f32.partialorder %v178, 0.7853982
  %vm180 = vcmp.lt.s32.totalorder %v176, 0
  %v181 = vand.u32 %v176, 2139095040
  %v182 = vshrl.u32 %v181, 23
  %v183 = vsub.s32 %v182, 127
  %v184 = vand.u32 2147483647, %v176
  %v185 = vand.u32 %v184, 8388607
  %v186 = vor.u32 %v185, 8388608
  %v187 = vsub.s32 0, %v186
  %v188 = vadd.s32 %v183, 1
  %vm189 = vcmp.gt.s32.totalorder %v188, 0
  %v190 = vsel %vm189, %v188, 0
  %v191 = vshrl.u32 %v190, 5
  %v192 = vand.u32 %v190, 31
  %v193 = vsub.s32 32, %v192
  %v194 = vshrl.u32 683565275, %v193
  %v195 = vshll.u32 683565275, %v192
  %v196 = vshrl.u32 2475754826, %v193
  %v197 = vor.u32 %v195, %v196
  %v198 = vshll.u32 2475754826, %v192
  %v199 = vshrl.u32 2131351028, %v193
  %v200 = vor.u32 %v198, %v199
  %v201 = vshll.u32 2131351028, %v192
  %v202 = vshrl.u32 2102212464, %v193
  %v203 = vor.u32 %v201, %v202
  %v204 = vshll.u32 2102212464, %v192
  %v205 = vshrl.u32 920167782, %v193
  %v206 = vor.u32 %v204, %v205
  %v207 = vshll.u32 920167782, %v192
  %v208 = vshrl.u32 1326507024, %v193
  %v209 = vor.u32 %v207, %v208
  %vm210 = vcmp.lt.s32.totalorder %v191, 1
  %vm211 = vcmp.lt.s32.totalorder %v191, 2
  %vm212 = vcmp.lt.s32.totalorder %v191, 3
  %vm213 = vcmp.lt.s32.totalorder %v191, 4
  %v214 = vsel %vm210, %v194, %v197
  %v215 = vsel %vm213, %v203, 2102212464
  %v216 = vsel %vm212, %v200, %v215
  %v217 = vsel %vm211, %v214, %v216
  %v218 = vsel %vm210, %v197, %v200
  %v219 = vsel %vm213, %v206, 920167782
  %v220 = vsel %vm212, %v203, %v219
  %v221 = vsel %vm211, %v218, %v220
  %v222 = vsel %vm210, %v200, %v203
  %v223 = vsel %vm213, %v209, 1326507024
  %v224 = vsel %vm212, %v206, %v223
  %v225 = vsel %vm211, %v222, %v224
  %v226 = vshll.u32 %v186, 8
  %v227 = vand.u32 %v226, 65535
  %v228 = vshrl.u32 %v226, 16
  %v229 = vand.u32 %v225, 65535
  %v230 = vshrl.u32 %v225, 16
  %v231 = vmul.u32 %v227, %v229
  %v232 = vmul.u32 %v227, %v230
  %v233 = vmul.u32 %v228, %v229
  %v234 = vmul.u32 %v228, %v230
  %v235 = vshll.u32 %v232, 16
  %v236 = vshrl.u32 %v232, 16
  %v237 = vshll.u32 %v233, 16
  %v238 = vshrl.u32 %v233, 16
  %vm239 = vc.u32 %v231, %v235
  %v240 = vsel %vm239, 1, 0
  %v241 = vadd.s32 %v231, %v235
  %v242 = vadd.s32 %v234, %v240
  %vm243 = vc.u32 %v241, %v237
  %v244 = vsel %vm243, 1, 0
  %v245 = vadd.s32 %v241, %v237
  %v246 = vadd.s32 %v242, %v244
  %v247 = vadd.s32 %v246, %v236
  %v248 = vadd.s32 %v247, %v238
  %v249 = vand.u32 %v226, 65535
  %v250 = vshrl.u32 %v226, 16
  %v251 = vand.u32 %v221, 65535
  %v252 = vshrl.u32 %v221, 16
  %v253 = vmul.u32 %v249, %v251
  %v254 = vmul.u32 %v249, %v252
  %v255 = vmul.u32 %v250, %v251
  %v256 = vmul.u32 %v250, %v252
  %v257 = vshll.u32 %v254, 16
  %v258 = vshrl.u32 %v254, 16
  %v259 = vshll.u32 %v255, 16
  %v260 = vshrl.u32 %v255, 16
  %vm261 = vc.u32 %v253, %v257
  %v262 = vsel %vm261, 1, 0
  %v263 = vadd.s32 %v253, %v257
  %v264 = vadd.s32 %v256, %v262
  %vm265 = vc.u32 %v263, %v259
  %v266 = vsel %vm265, 1, 0
  %v267 = vadd.s32 %v263, %v259
  %v268 = vadd.s32 %v264, %v266
  %v269 = vadd.s32 %v268, %v258
  %v270 = vadd.s32 %v269, %v260
  %v271 = vmul.u32 %v226, %v217
  %v272 = vadd.s32 %v248, %v267
  %vm273 = vc.u32 %v248, %v267
  %v274 = vadd.s32 %v270, 1
  %v275 = vsel %vm273, %v274, %v270
  %v276 = vadd.s32 %v271, %v275
  %v277 = vadd.s32 %v276, 536870912
  %v278 = vshrl.u32 %v277, 30
  %v279 = vshll.u32 %v278, 30
  %v280 = vsub.s32 %v276, %v279
  %vm281 = vcmp.lt.s32.totalorder %v280, 0
  %v282 = vsub.s32 0, %v280
  %v283 = vsel %vm281, %v282, %v280
  %v284 = vclz %v283
  %v285 = vsub.s32 %v284, 2
  %vm286 = vcmp.gt.s32.totalorder 0, %v285
  %v287 = vsel %vm286, 0, %v285
  %v288 = vsub.s32 32, %v287
  %v289 = vshll.u32 %v280, %v287
  %v290 = vshrl.u32 %v272, %v288
  %v291 = vor.u32 %v289, %v290
  %v292 = vsub.s32 4294967266, %v287
  %v293 = vadd.s32 %v292, 127
  %v294 = vshll.u32 %v293, 23
  %v295 = vor.u32 4788187, %v294
  %v296 = vand.u32 2147483647, %v295
  %v298 = vcvt.s32.f32 %v291
  %v299 = vmul.f32 %v298, %v296
  %v300 = vxor.u32 %v299, 2147483648
  %v301 = vsel %vm180, %v300, %v299
  %v302 = vsub.s32 4, %v278
  %v303 = vsel %vm180, %v302, %v278
  %v304 = vsel %vm179, %v176, %v301
  %v305 = vsel %vm179, 0, %v303
  %v306 = vmul.f32 %v304, %v304
  %v307 = vmul.f32 %v306, -0.001358992
  %v308 = vadd.f32 %v307, 0.041655596
  %v309 = vmul.f32 %v306, %v308
  %v310 = vadd.f32 %v309, -0.4999988
  %v311 = vmul.f32 %v306, %v310
  %v312 = vadd.f32 1.0, %v311
  %v313 = vmul.f32 %v304, %v304
  %v314 = vmul.f32 %v313, -0.00019511016
  %v315 = vadd.f32 %v314, 0.008332121
  %v316 = vmul.f32 %v313, %v315
  %v317 = vadd.f32 %v316, -0.16666654
  %v318 = vmul.f32 %v313, %v317
  %v319 = vadd.f32 %v318, 1.0
  %v320 = vmul.f32 %v319, %v304
  %vm321 = vweird.f32 %v176
  %v322 = vadd.s32 %v305, 3
  %v323 = vand.u32 %v322, 3
  %vm324 = vcmp.lt.s32.totalorder %v323, 2
  %vm325 = vcmp.eq.s32.totalorder %v323, 0
  %v326 = vxor.u32 %v320, 2147483648
  %v327 = vsel %vm325, %v312, %v326
  %vm328 = vcmp.eq.s32.totalorder %v323, 2
  %v329 = vxor.u32 %v312, 2147483648
  %v330 = vsel %vm328, %v329, %v320
  %v331 = vsel %vm324, %v327, %v330
  %v332 = vsel %vm321, nan, %v331
  %v333 = vsel %vm177, 1, 0
  %v334 = vperm.slane %v333, 0
  %vm335 = vcmp.eq.s32.totalorder %v334, 1
  %v336 = vsel %vm335, %v176, %v332
  %337 = vst [vmem:[%s3] sm:$0x3] %v336
  // Predicated region
  $region14: #{positional_encoding.1} parent=0 // pred_check
    _
  $region15: #{positional_encoding.1} parent=0 // pred_check_branch
    %339 = sbr.rel (0) target = $region17
  $region16: #{positional_encoding.1} parent=0 // pred_region
    _
  $region17: #{positional_encoding.1} parent=0 // pred_fallthru
    _
  // Predicated region
  $region18: #{positional_encoding.1} parent=0 // pred_check
    _
  $region19: #{positional_encoding.1} parent=0 // pred_check_branch
    %341 = sbr.rel (0) target = $region21
  $region20: #{positional_encoding.1} parent=0 // pred_region
    _
  $region21: #{positional_encoding.1} parent=0 // pred_fallthru
    _

</llo_original>
